<compile_context>
chip_gen: v6e
topology: v6e:2x2x1
jax: 0.10.0
libtpu: 0.0.40
codegen_flags: <defaults>
</compile_context>

<pallas_src>
import functools

import jax
import jax.numpy as jnp
from jax.experimental import pallas as pl
from jax.experimental.pallas import tpu as pltpu

_LANE = 128


def _round_up(n, m):
    return (n + m - 1) // m * m


def _sublanes(dtype):
    # rows per vreg sublane group: 8 f32 / 16 bf16 / 32 int8
    return max(8, 32 // jnp.dtype(dtype).itemsize)


def _tile_bytes(rows, cols, dtype):
    """VMEM footprint of a (rows, cols) tile after (sublane, 128) layout pad."""
    itemsize = jnp.dtype(dtype).itemsize
    return (_round_up(max(int(rows), 1), _sublanes(dtype))
            * _round_up(max(int(cols), 1), _LANE) * itemsize)


@functools.lru_cache(maxsize=1)
def _vmem_budget_bytes():
    """~75% of the physical per-core VMEM (generation-aware)."""
    try:
        cap = int(pltpu.get_tpu_info().vmem_capacity_bytes)
    except Exception:
        cap = 64 * 1024 * 1024  # conservative (v7x-sized) default
    return cap * 3 // 4          # ~96 MiB v5e/v6e, ~48 MiB v7x


@functools.lru_cache(maxsize=1)
def _single_buffer_supported():
    """Feature-detect pl.Buffered(1) (single-buffered resident blocks) by
    lowering+compiling a trivial kernel once, so a rejection can never surface
    later inside an outer jit."""
    if not hasattr(pl, "Buffered"):
        return False

    def _copy(x_ref, o_ref):
        o_ref[...] = x_ref[...]

    try:
        fn = pl.pallas_call(
            _copy,
            out_shape=jax.ShapeDtypeStruct((8, _LANE), jnp.float32),
            grid=(1,),
            in_specs=[pl.BlockSpec((8, _LANE), lambda i: (0, 0),
                                   pipeline_mode=pl.Buffered(1))],
            out_specs=pl.BlockSpec((8, _LANE), lambda i: (0, 0)),
        )
        jax.jit(fn).lower(
            jax.ShapeDtypeStruct((8, _LANE), jnp.float32)).compile()
        return True
    except Exception:
        return False


# ----------------------------- fused MLP kernel -----------------------------

def _mlp_fused_kernel(num_layers, compute_dtype, x_ref, *refs):
    # refs = (w0, b0, w1, b1, ..., w_{L-1}, b_{L-1}, out)
    o_ref = refs[-1]
    params = refs[:-1]
    h = x_ref[...]
    for i in range(num_layers):
        w = params[2 * i][...]            # already cast to compute_dtype
        b = params[2 * i + 1][...]
        h = jnp.dot(h.astype(compute_dtype), w,
                    preferred_element_type=jnp.float32)
        h = h + b.astype(jnp.float32)
        if i < num_layers - 1:
            h = jnp.maximum(h, 0.0)       # F.relu
    o_ref[...] = h.astype(o_ref.dtype)


# -------------------- un-fused per-layer fallback kernel --------------------

def _linear_kernel(apply_relu, x_ref, w_ref, b_ref, o_ref, acc_ref):
    @pl.when(pl.program_id(2) == 0)
    def _():
        acc_ref[...] = jnp.zeros_like(acc_ref)

    acc_ref[...] += jnp.dot(x_ref[...], w_ref[...],
                            preferred_element_type=jnp.float32)

    @pl.when(pl.program_id(2) == pl.num_programs(2) - 1)
    def _():
        r = acc_ref[...] + b_ref[...].astype(jnp.float32)
        if apply_relu:
            r = jnp.maximum(r, 0.0)
        o_ref[...] = r.astype(o_ref.dtype)


def _linear_pallas(x2d, w, b, *, apply_relu, compute_dtype, out_dtype):
    """One Linear(+ReLU) as a K/N-tiled matmul with an f32 VMEM accumulator.
    Used when the full weight set is too large to keep resident in VMEM."""
    M, K = x2d.shape
    N = w.shape[1]
    tm = min(512, _round_up(M, 8))
    tk = min(512, _round_up(K, _LANE))
    tn = min(512, _round_up(N, _LANE))
    Kp = _round_up(K, tk)
    Np = _round_up(N, tn)

    xc = x2d.astype(compute_dtype)
    wc = w.astype(compute_dtype)
    if Kp != K:   # zero-pad the reduction dim so partial K blocks never occur
        xc = jnp.pad(xc, ((0, 0), (0, Kp - K)))
        wc = jnp.pad(wc, ((0, Kp - K), (0, 0)))
    if Np != N:
        wc = jnp.pad(wc, ((0, 0), (0, Np - N)))
    bp = jnp.pad(b.astype(jnp.float32), (0, Np - N)).reshape(1, -1)

    grid = (pl.cdiv(M, tm), Np // tn, Kp // tk)
    out = pl.pallas_call(
        functools.partial(_linear_kernel, apply_relu),
        out_shape=jax.ShapeDtypeStruct((M, Np), out_dtype),
        grid_spec=pltpu.PrefetchScalarGridSpec(
            num_scalar_prefetch=0,
            grid=grid,
            in_specs=[pl.BlockSpec((tm, tk), lambda i, j, k: (i, k)),
                      pl.BlockSpec((tk, tn), lambda i, j, k: (k, j)),
                      pl.BlockSpec((1, tn), lambda i, j, k: (0, j))],
            out_specs=pl.BlockSpec((tm, tn), lambda i, j, k: (i, j)),
            scratch_shapes=[pltpu.VMEM((tm, tn), jnp.float32)],
        ),
        compiler_params=pltpu.CompilerParams(
            dimension_semantics=("parallel", "parallel", "arbitrary")),
    )(xc, wc, bp)
    return out[:, :N] if Np != N else out


# --------------------------------- wrapper ----------------------------------

def mlp_pallas(x, weights, biases, *, use_bf16_matmul=False,
               force_unfused=False):
    """x: (..., input_dim). weights[i]: (in_i, out_i) (transpose of PyTorch's
    (out, in)). biases[i]: (out_i,). Returns (..., output_dim)."""
    num_layers = len(weights)
    assert num_layers >= 1 and len(biases) == num_layers
    orig_shape = x.shape
    in_dim = orig_shape[-1]
    out_dim = weights[-1].shape[1]
    out_dtype = x.dtype

    # Explicit MXU operand dtype policy: default promotes to the common dtype
    # of x / weights (matches the reference numerics); bf16 operands (f32
    # accumulation) are opt-in for the v6e/v7x MXU fast path.
    if use_bf16_matmul:
        compute_dtype = jnp.bfloat16
    else:
        compute_dtype = jnp.promote_types(x.dtype, weights[0].dtype)

    x2d = x.reshape(-1, in_dim)
    n_rows = x2d.shape[0]
    budget = _vmem_budget_bytes()

    single_buffer = _single_buffer_supported()
    param_mult = 1 if single_buffer else 2

    # Lane-dense intermediate feature dims; the FINAL layer's output dim is
    # left unpadded so the HBM writeback is (n_rows, out_dim) with no wrapper
    # slice copy. Zero-padded columns/bias give exactly-zero extra activations
    # that zero-padded rows of the next weight consume, so results are exact.
    out_dims_p = [_round_up(w.shape[1], _LANE) for w in weights[:-1]] + [out_dim]
    in_dims_p = [in_dim] + out_dims_p[:-1]

    w_pad, b_pad = [], []
    for i, (w, b) in enumerate(zip(weights, biases)):
        di, do = w.shape
        wp = jnp.pad(w, ((0, in_dims_p[i] - di), (0, out_dims_p[i] - do)))
        bp = jnp.pad(b, (0, out_dims_p[i] - do)).reshape(1, -1)
        w_pad.append(wp.astype(compute_dtype))
        b_pad.append(bp)

    param_bytes = sum(_tile_bytes(a.shape[0], a.shape[1], a.dtype)
                      for a in (*w_pad, *b_pad))
    max_feat_p = max(out_dims_p + [_round_up(in_dim, _LANE)])
    sub = _sublanes(x.dtype)

    def vmem_est(tm):
        acts = 2 * _tile_bytes(tm, in_dim, x.dtype)       # double-buffered x
        outs = 2 * _tile_bytes(tm, out_dim, out_dtype)    # double-buffered out
        # two f32 intermediates live at once + one compute-dtype MXU operand
        inter = (2 * _tile_bytes(tm, max_feat_p, jnp.float32)
                 + _tile_bytes(tm, max_feat_p, compute_dtype))
        return acts + outs + param_mult * param_bytes + inter + (2 << 20)

    fits_resident = (param_mult * param_bytes <= budget // 2
                     and vmem_est(sub) <= budget)
    if force_unfused or not fits_resident:
        # Weights too big to keep resident (e.g. large hidden dims on v7x's
        # 64 MiB/TC): un-fuse into per-layer K/N-tiled matmuls.
        h = x2d
        for i in range(num_layers):
            last = i == num_layers - 1
            h = _linear_pallas(h, weights[i], biases[i],
                               apply_relu=not last,
                               compute_dtype=compute_dtype,
                               out_dtype=out_dtype if last else jnp.float32)
        return h.reshape(*orig_shape[:-1], out_dim)

    # --- row tile sizing: shrink to fit, then grow to the budget ceiling ---
    max_tile = min(8192, _round_up(n_rows, sub))
    tile_m = min(_round_up(512, sub), max_tile)
    while tile_m > sub and vmem_est(tile_m) > budget:
        tile_m = max(sub, _round_up(tile_m // 2, sub))
    while tile_m < max_tile:
        nxt = min(max_tile, _round_up(tile_m * 2, sub))
        if vmem_est(nxt) > budget:
            break
        tile_m = nxt

    grid = (pl.cdiv(n_rows, tile_m),)
    vmem_limit = int(min(budget,
                         max(32 * 1024 * 1024, int(1.25 * vmem_est(tile_m)))))

    def resident_spec(shape):
        # Constant index_map -> block is not re-fetched; single-buffer it when
        # supported to reclaim VMEM for larger activation tiles.
        if single_buffer:
            return pl.BlockSpec(shape, lambda i: (0, 0),
                                pipeline_mode=pl.Buffered(1))
        return pl.BlockSpec(shape, lambda i: (0, 0))

    in_specs = [pl.BlockSpec((tile_m, in_dim), lambda i: (i, 0))]
    args = [x2d]
    for wp, bp in zip(w_pad, b_pad):
        in_specs.append(resident_spec(wp.shape))
        in_specs.append(resident_spec(bp.shape))
        args.extend([wp, bp])

    out = pl.pallas_call(
        functools.partial(_mlp_fused_kernel, num_layers, compute_dtype),
        out_shape=jax.ShapeDtypeStruct((n_rows, out_dim), out_dtype),
        grid_spec=pltpu.PrefetchScalarGridSpec(
            num_scalar_prefetch=0,
            grid=grid,
            in_specs=in_specs,
            out_specs=pl.BlockSpec((tile_m, out_dim), lambda i: (i, 0)),
        ),
        compiler_params=pltpu.CompilerParams(
            dimension_semantics=("parallel",),
            vmem_limit_bytes=vmem_limit),
    )(*args)
    return out.reshape(*orig_shape[:-1], out_dim)


# ------------------------------ init / reference ----------------------------

def init_mlp_params(key, input_dim, hidden_dim, output_dim, num_layers,
                    dtype=jnp.float32):
    """Deterministic init mirroring the nn.Linear layers in MLP.
    Weight returned as (in, out), i.e. transpose of PyTorch's (out, in)."""
    h = [hidden_dim] * (num_layers - 1)
    dims_in = [input_dim] + h
    dims_out = h + [output_dim]
    weights, biases = [], []
    for n, k in zip(dims_in, dims_out):
        key, kw, kb = jax.random.split(key, 3)
        bound = 1.0 / (n ** 0.5)
        weights.append(jax.random.uniform(kw, (n, k), dtype, -bound, bound))
        biases.append(jax.random.uniform(kb, (k,), dtype, -bound, bound))
    return weights, biases


def mlp_reference(x, weights, biases):
    num_layers = len(weights)
    h = x
    for i, (w, b) in enumerate(zip(weights, biases)):
        h = h @ w + b
        if i < num_layers - 1:
            h = jnp.maximum(h, 0.0)
    return h


if __name__ == "__main__":
    key = jax.random.PRNGKey(0)
    k_x, k_p = jax.random.split(key)

    # MLP(input_dim=16, hidden_dim=32, output_dim=8, num_layers=3)
    input_dim, hidden_dim, output_dim, num_layers = 16, 32, 8, 3
    batch, seq = 2, 8
    x = jax.random.normal(k_x, (batch, seq, input_dim), dtype=jnp.float32)
    weights, biases = init_mlp_params(k_p, input_dim, hidden_dim, output_dim,
                                      num_layers)

    ref = mlp_reference(x, weights, biases)

    # fused (weights-resident) path
    out = jax.block_until_ready(mlp_pallas(x, weights, biases))
    assert out.shape == (batch, seq, output_dim), out.shape
    assert jnp.allclose(out, ref, atol=1e-5, rtol=1e-5), (
        float(jnp.max(jnp.abs(out - ref))))

    # un-fused per-layer fallback path (used when weights don't fit in VMEM)
    out_u = jax.block_until_ready(
        mlp_pallas(x, weights, biases, force_unfused=True))
    assert jnp.allclose(out_u, ref, atol=1e-5, rtol=1e-5), (
        float(jnp.max(jnp.abs(out_u - ref))))

    print("KERNEL_OK")
</pallas_src>

<mosaic_0001>
module attributes {stable_mosaic.version = 11 : i64} {
  func.func @_mlp_fused_kernel(%arg0: i32, %arg1: memref<16x16xf32, #tpu.memory_space<vmem>>, %arg2: memref<16x128xf32, #tpu.memory_space<vmem>>, %arg3: memref<1x128xf32, #tpu.memory_space<vmem>>, %arg4: memref<128x128xf32, #tpu.memory_space<vmem>>, %arg5: memref<1x128xf32, #tpu.memory_space<vmem>>, %arg6: memref<128x8xf32, #tpu.memory_space<vmem>>, %arg7: memref<1x8xf32, #tpu.memory_space<vmem>>, %arg8: memref<16x8xf32, #tpu.memory_space<vmem>>) attributes {dimension_semantics = [#tpu.dimension_semantics<parallel>], iteration_bounds = array<i64: 1>, scalar_prefetch = 0 : i64, scratch_operands = 0 : i64, tpu.core_type = #tpu.core_type<tc>, window_params = [{transform_indices = @transform_0, window_bounds = array<i64: 16, 16>}, {pipeline_mode = #tpu.pipeline_mode<synchronous>, transform_indices = @transform_1, window_bounds = array<i64: 16, 128>}, {pipeline_mode = #tpu.pipeline_mode<synchronous>, transform_indices = @transform_2, window_bounds = array<i64: 1, 128>}, {pipeline_mode = #tpu.pipeline_mode<synchronous>, transform_indices = @transform_3, window_bounds = array<i64: 128, 128>}, {pipeline_mode = #tpu.pipeline_mode<synchronous>, transform_indices = @transform_4, window_bounds = array<i64: 1, 128>}, {pipeline_mode = #tpu.pipeline_mode<synchronous>, transform_indices = @transform_5, window_bounds = array<i64: 128, 8>}, {pipeline_mode = #tpu.pipeline_mode<synchronous>, transform_indices = @transform_6, window_bounds = array<i64: 1, 8>}, {transform_indices = @transform_7, window_bounds = array<i64: 16, 8>}]} {
    %c0 = arith.constant 0 : index
    %c0_0 = arith.constant 0 : index
    %0 = vector.load %arg1[%c0, %c0_0] : memref<16x16xf32, #tpu.memory_space<vmem>>, vector<16x16xf32>
    %c0_1 = arith.constant 0 : index
    %c0_2 = arith.constant 0 : index
    %1 = vector.load %arg2[%c0_1, %c0_2] : memref<16x128xf32, #tpu.memory_space<vmem>>, vector<16x128xf32>
    %c0_3 = arith.constant 0 : index
    %c0_4 = arith.constant 0 : index
    %2 = vector.load %arg3[%c0_3, %c0_4] : memref<1x128xf32, #tpu.memory_space<vmem>>, vector<1x128xf32>
    %cst = arith.constant dense<0.000000e+00> : vector<16x128xf32>
    %3 = tpu.matmul %0, %1, %cst {dimension_numbers = #tpu.dot_dimension_numbers<[1], [0], [0], [1], [0, 0, 1, 1], [], []>} : vector<16x16xf32>, vector<16x128xf32>, vector<16x128xf32> -> vector<16x128xf32>
    %4 = vector.broadcast %2 : vector<1x128xf32> to vector<16x128xf32>
    %5 = arith.addf %3, %4 : vector<16x128xf32>
    %cst_5 = arith.constant 0.000000e+00 : f32
    %6 = vector.broadcast %cst_5 : f32 to vector<16x128xf32>
    %7 = arith.maximumf %5, %6 : vector<16x128xf32>
    %c0_6 = arith.constant 0 : index
    %c0_7 = arith.constant 0 : index
    %8 = vector.load %arg4[%c0_6, %c0_7] : memref<128x128xf32, #tpu.memory_space<vmem>>, vector<128x128xf32>
    %c0_8 = arith.constant 0 : index
    %c0_9 = arith.constant 0 : index
    %9 = vector.load %arg5[%c0_8, %c0_9] : memref<1x128xf32, #tpu.memory_space<vmem>>, vector<1x128xf32>
    %cst_10 = arith.constant dense<0.000000e+00> : vector<16x128xf32>
    %10 = tpu.matmul %7, %8, %cst_10 {dimension_numbers = #tpu.dot_dimension_numbers<[1], [0], [0], [1], [0, 0, 1, 1], [], []>} : vector<16x128xf32>, vector<128x128xf32>, vector<16x128xf32> -> vector<16x128xf32>
    %11 = vector.broadcast %9 : vector<1x128xf32> to vector<16x128xf32>
    %12 = arith.addf %10, %11 : vector<16x128xf32>
    %cst_11 = arith.constant 0.000000e+00 : f32
    %13 = vector.broadcast %cst_11 : f32 to vector<16x128xf32>
    %14 = arith.maximumf %12, %13 : vector<16x128xf32>
    %c0_12 = arith.constant 0 : index
    %c0_13 = arith.constant 0 : index
    %15 = vector.load %arg6[%c0_12, %c0_13] : memref<128x8xf32, #tpu.memory_space<vmem>>, vector<128x8xf32>
    %c0_14 = arith.constant 0 : index
    %c0_15 = arith.constant 0 : index
    %16 = vector.load %arg7[%c0_14, %c0_15] : memref<1x8xf32, #tpu.memory_space<vmem>>, vector<1x8xf32>
    %cst_16 = arith.constant dense<0.000000e+00> : vector<16x8xf32>
    %17 = tpu.matmul %14, %15, %cst_16 {dimension_numbers = #tpu.dot_dimension_numbers<[1], [0], [0], [1], [0, 0, 1, 1], [], []>} : vector<16x128xf32>, vector<128x8xf32>, vector<16x8xf32> -> vector<16x8xf32>
    %18 = vector.broadcast %16 : vector<1x8xf32> to vector<16x8xf32>
    %19 = arith.addf %17, %18 : vector<16x8xf32>
    %c0_17 = arith.constant 0 : index
    %c0_18 = arith.constant 0 : index
    %20 = vector.load %arg8[%c0_17, %c0_18] : memref<16x8xf32, #tpu.memory_space<vmem>>, vector<16x8xf32>
    tpu.vector_store %arg8[%c0_17, %c0_18], %19 {strides = array<i32>} : memref<16x8xf32, #tpu.memory_space<vmem>>, vector<16x8xf32>,
    return
  }
  func.func @transform_0(%arg0: i32) -> (i32, i32) {
    %c0_i32 = arith.constant 0 : i32
    %c0_i32_0 = arith.constant 0 : i32
    return %arg0, %c0_i32 : i32, i32
  }
  func.func @transform_1(%arg0: i32) -> (i32, i32) {
    %c0_i32 = arith.constant 0 : i32
    %c0_i32_0 = arith.constant 0 : i32
    %c0_i32_1 = arith.constant 0 : i32
    return %c0_i32, %c0_i32_0 : i32, i32
  }
  func.func @transform_2(%arg0: i32) -> (i32, i32) {
    %c0_i32 = arith.constant 0 : i32
    %c0_i32_0 = arith.constant 0 : i32
    %c0_i32_1 = arith.constant 0 : i32
    return %c0_i32, %c0_i32_0 : i32, i32
  }
  func.func @transform_3(%arg0: i32) -> (i32, i32) {
    %c0_i32 = arith.constant 0 : i32
    %c0_i32_0 = arith.constant 0 : i32
    %c0_i32_1 = arith.constant 0 : i32
    return %c0_i32, %c0_i32_0 : i32, i32
  }
  func.func @transform_4(%arg0: i32) -> (i32, i32) {
    %c0_i32 = arith.constant 0 : i32
    %c0_i32_0 = arith.constant 0 : i32
    %c0_i32_1 = arith.constant 0 : i32
    return %c0_i32, %c0_i32_0 : i32, i32
  }
  func.func @transform_5(%arg0: i32) -> (i32, i32) {
    %c0_i32 = arith.constant 0 : i32
    %c0_i32_0 = arith.constant 0 : i32
    %c0_i32_1 = arith.constant 0 : i32
    return %c0_i32, %c0_i32_0 : i32, i32
  }
  func.func @transform_6(%arg0: i32) -> (i32, i32) {
    %c0_i32 = arith.constant 0 : i32
    %c0_i32_0 = arith.constant 0 : i32
    %c0_i32_1 = arith.constant 0 : i32
    return %c0_i32, %c0_i32_0 : i32, i32
  }
  func.func @transform_7(%arg0: i32) -> (i32, i32) {
    %c0_i32 = arith.constant 0 : i32
    %c0_i32_0 = arith.constant 0 : i32
    return %arg0, %c0_i32 : i32, i32
  }
}

</mosaic_0001>

<llo_original>
// kernel: tpu_custom_call.1
$region0: #{tpu_custom_call.1}
  #allocation0 [shape = 'u32[]', space=smem, size = 0x4, offset = 0x4, fixed_abs, tag = 'smem constant byte address 0x4 - core index']
  #allocation1 [shape = 'u32[144,128]{1,0:T(1,128)}', space=vmem, size = 0x12000, scoped, tag = 'internal scratch']
  %s0 = inlined_call_operand.hbm [shape: f32[16,16], index: 0, kind: input, shape index: {}]
  %s1 = inlined_call_operand.hbm [shape: f32[16,128], index: 1, kind: input, shape index: {}]
  %s2 = inlined_call_operand.vmem [shape: f32[1,128], index: 2, kind: input, shape index: {}]
  %s3 = inlined_call_operand.vmem [shape: f32[128,128], index: 3, kind: input, shape index: {}]
  %s4 = inlined_call_operand.vmem [shape: f32[1,128], index: 4, kind: input, shape index: {}]
  %s5 = inlined_call_operand.vmem [shape: f32[128,8], index: 5, kind: input, shape index: {}]
  %s6 = inlined_call_operand.vmem [shape: f32[1,8], index: 6, kind: input, shape index: {}]
  %s7 = inlined_call_operand.vmem [shape: f32[16,8], index: 7, kind: output, shape index: {}]
  %s8 = sld [smem:[#allocation0]]
  $region46: #{tpu_custom_call.1} parent=0
    _
  %s10 = ssub.s32 1, %s8
  %s11 = scalar_select 0, %s10, %s8
  $region1: #{tpu_custom_call.1} parent=0
    #allocation2 [shape = 'u8[8192]{0}', space=vmem, size = 0x2000, scoped, tag = 'input window, operand 0, single buffered']
    #allocation3 [shape = 's32[1]{0}', space=sflag, size = 0x4, scoped, tag = 'scoped memory for tpu_custom_call.1']
    #allocation4 [shape = 'u8[8192]{0}', space=vmem, size = 0x2000, scoped, tag = 'input window, operand 1, single buffered']
    #allocation5 [shape = 's32[1]{0}', space=sflag, size = 0x4, scoped, tag = 'scoped memory for tpu_custom_call.1']
    %12 = vsyncpa [#allocation3], 0
    %13 = vsyncpa [#allocation5], 0
    // Predicated region
    $region2: #{tpu_custom_call.1} parent=1 // pred_check
      _
    $region3: #{tpu_custom_call.1} parent=1 // pred_check_branch
      %15 = sbr.rel (0) target = $region5
    $region4: #{tpu_custom_call.1} parent=1 // pred_region
      %s17 = ssub.s32 256, 256
      %18 = vsyncadd [#allocation3], %s17
      %s19 = sshll.u32 [#allocation2], 4
      %s20 = int_to_ptr.vmem [resolvable:$true] %s19
      %25 = dma.hbm_to_vmem [thread:$0]  %s0, 256, %s20, [#allocation3], 128, 128, 8
    $region5: #{tpu_custom_call.1} parent=1 // pred_fallthru
      _
    // Predicated region
    $region6: #{tpu_custom_call.1} parent=1 // pred_check
      _
    $region7: #{tpu_custom_call.1} parent=1 // pred_check_branch
      %27 = sbr.rel (0) target = $region9
    $region8: #{tpu_custom_call.1} parent=1 // pred_region
      %s29 = ssub.s32 256, 256
      %30 = vsyncadd [#allocation5], %s29
      %s31 = sshll.u32 [#allocation4], 4
      %s32 = int_to_ptr.vmem [resolvable:$true] %s31
      %37 = dma.hbm_to_vmem [thread:$0]  %s1, 256, %s32, [#allocation5], 128, 128, 8
    $region9: #{tpu_custom_call.1} parent=1 // pred_fallthru
      _
    // Predicated region
    $region10: #{tpu_custom_call.1} parent=1 // pred_check
      _
    $region11: #{tpu_custom_call.1} parent=1 // pred_check_branch
      %39 = sbr.rel (0) target = $region13
    $region12: #{tpu_custom_call.1} parent=1 // pred_region
      _
    $region13: #{tpu_custom_call.1} parent=1 // pred_fallthru
      _
    // Predicated region
    $region14: #{tpu_custom_call.1} parent=1 // pred_check
      _
    $region15: #{tpu_custom_call.1} parent=1 // pred_check_branch
      %41 = sbr.rel (0) target = $region17
    $region16: #{tpu_custom_call.1} parent=1 // pred_region
      _
    $region17: #{tpu_custom_call.1} parent=1 // pred_fallthru
      _
    // Predicated region
    $region18: #{tpu_custom_call.1} parent=1 // pred_check
      _
    $region19: #{tpu_custom_call.1} parent=1 // pred_check_branch
      %43 = sbr.rel (0) target = $region21
    $region20: #{tpu_custom_call.1} parent=1 // pred_region
      _
    $region21: #{tpu_custom_call.1} parent=1 // pred_fallthru
      _
    // Predicated region
    $region22: #{tpu_custom_call.1} parent=1 // pred_check
      _
    $region23: #{tpu_custom_call.1} parent=1 // pred_check_branch
      %45 = sbr.rel (0) target = $region25
    $region24: #{tpu_custom_call.1} parent=1 // pred_region
      _
    $region25: #{tpu_custom_call.1} parent=1 // pred_fallthru
      _
    // Predicated region
    $region26: #{tpu_custom_call.1} parent=1 // pred_check
      _
    $region27: #{tpu_custom_call.1} parent=1 // pred_check_branch
      %47 = sbr.rel (0) target = $region29
    $region28: #{tpu_custom_call.1} parent=1 // pred_region
      _
    $region29: #{tpu_custom_call.1} parent=1 // pred_fallthru
      _
    // Predicated region
    $region30: #{tpu_custom_call.1} parent=1 // pred_check
      _
    $region31: #{tpu_custom_call.1} parent=1 // pred_check_branch
      %49 = sbr.rel (0) target = $region33
    $region32: #{tpu_custom_call.1} parent=1 // pred_region
      %50 = dma.done [#allocation3], 256
    $region33: #{tpu_custom_call.1} parent=1 // pred_fallthru
      _
    // Predicated region
    $region34: #{tpu_custom_call.1} parent=1 // pred_check
      _
    $region35: #{tpu_custom_call.1} parent=1 // pred_check_branch
      %52 = sbr.rel (0) target = $region37
    $region36: #{tpu_custom_call.1} parent=1 // pred_region
      %53 = dma.done [#allocation5], 256
    $region37: #{tpu_custom_call.1} parent=1 // pred_fallthru
      _
    %v54 = vld [vmem:[#allocation2] sm:$0xff]
    %v55 = vld [vmem:[#allocation2 + $0x8] sm:$0xff]
    %v56 = vld [vmem:[#allocation4] sm:$0xff]
    %v57 = vld [vmem:[#allocation4 + $0x8] sm:$0xff]
    %v58 = vld [vmem:[%s2] sm:$0x1]
    %v60 = vlaneseq
    %v61 = vshrl.u32 %v60, 7
    %v62 = vsub.s32 0, %v61
    %v63 = vrot.slane %v58, %v62
    %vm65 = vcmask 130048
    %v67 = vsel %vm65, %v54, 0
    %v70 = vsel %vm65, %v55, 0
    %72 = vmatprep.subr.mxu0 0.0
    %73 = vmatpush1.msra.mxu0 0.0
    %74 = vmatprep.subr.mxu0 0.0
    %75 = vmatpush1.msra.mxu0 0.0
    %76 = vmatprep.subr.mxu0 0.0
    %77 = vmatpush1.msra.mxu0 0.0
    %78 = vmatprep.subr.mxu0 0.0
    %79 = vmatpush1.msra.mxu0 0.0
    %80 = vmatprep.subr.mxu0 0.0
    %81 = vmatpush1.msra.mxu0 0.0
    %82 = vmatprep.subr.mxu0 0.0
    %83 = vmatpush1.msra.mxu0 0.0
    %84 = vmatprep.subr.mxu0 0.0
    %85 = vmatpush1.msra.mxu0 0.0
    %86 = vmatprep.subr.mxu0 0.0
    %87 = vmatpush1.msra.mxu0 0.0
    %88 = vmatprep.subr.mxu0 0.0
    %89 = vmatpush1.msra.mxu0 0.0
    %90 = vmatprep.subr.mxu0 0.0
    %91 = vmatpush1.msra.mxu0 0.0
    %92 = vmatprep.subr.mxu0 0.0
    %93 = vmatpush1.msra.mxu0 0.0
    %94 = vmatprep.subr.mxu0 0.0
    %95 = vmatpush1.msra.mxu0 0.0
    %96 = vmatprep.subr.mxu0 0.0
    %97 = vmatpush1.msra.mxu0 0.0
    %98 = vmatprep.subr.mxu0 0.0
    %99 = vmatpush1.msra.mxu0 0.0
    %100 = vmatprep.subr.mxu0 0.0
    %101 = vmatpush1.msra.mxu0 %v57
    %102 = vmatprep.subr.mxu0 0.0
    %103 = vmatpush1.msra.mxu0 %v56
    %104 = vmatprep.subr.mxu0 0.0
    %105 = vmatpush2.msra.mxu0 0.0
    %106 = vmatprep.subr.mxu0 0.0
    %107 = vmatpush2.msra.mxu0 0.0
    %108 = vmatprep.subr.mxu0 0.0
    %109 = vmatpush2.msra.mxu0 0.0
    %110 = vmatprep.subr.mxu0 0.0
    %111 = vmatpush2.msra.mxu0 0.0
    %112 = vmatprep.subr.mxu0 0.0
    %113 = vmatpush2.msra.mxu0 0.0
    %114 = vmatprep.subr.mxu0 0.0
    %115 = vmatpush2.msra.mxu0 0.0
    %116 = vmatprep.subr.mxu0 0.0
    %117 = vmatpush2.msra.mxu0 0.0
    %118 = vmatprep.subr.mxu0 0.0
    %119 = vmatpush2.msra.mxu0 0.0
    %120 = vmatprep.subr.mxu0 0.0
    %121 = vmatpush2.msra.mxu0 0.0
    %122 = vmatprep.subr.mxu0 0.0
    %123 = vmatpush2.msra.mxu0 0.0
    %124 = vmatprep.subr.mxu0 0.0
    %125 = vmatpush2.msra.mxu0 0.0
    %126 = vmatprep.subr.mxu0 0.0
    %127 = vmatpush2.msra.mxu0 0.0
    %128 = vmatprep.subr.mxu0 0.0
    %129 = vmatpush2.msra.mxu0 0.0
    %130 = vmatprep.subr.mxu0 0.0
    %131 = vmatpush2.msra.mxu0 0.0
    %132 = vmatprep.subr.mxu0 0.0
    %133 = vmatpush2.msra.mxu0 0.0
    %134 = vmatprep.subr.mxu0 0.0
    %135 = vmatpush2.msra.mxu0 0.0
    %136 = vmatprep.mubr.f32.mxu0 0.0
    %137 = vmatmul.mubr.f32.gmra.mxu0 %v67
    %v138 = vpop.f32.mrf.mxu0
    %v139 = vadd.f32 %v63, %v138
    %v140 = vpop.f32.mrf.mxu0
    %141 = vmatprep.mubr.f32.mxu0 0.0
    %142 = vmatmul.mubr.f32.gmra.mxu0 %v70
    %v143 = vpop.f32.mrf.mxu0
    %v144 = vadd.f32 %v63, %v143
    %v145 = vpop.f32.mrf.mxu0
    %146 = vdwg.mxu0
    %v147 = vmax.f32 %v139, 0.0
    %v148 = vmax.f32 %v144, 0.0
    %v149 = vld [vmem:[%s3] sm:$0xff]
    %v150 = vld [vmem:[%s3 + $0x8] sm:$0xff]
    %v151 = vld [vmem:[%s3 + $0x10] sm:$0xff]
    %v152 = vld [vmem:[%s3 + $0x18] sm:$0xff]
    %v153 = vld [vmem:[%s3 + $0x20] sm:$0xff]
    %v154 = vld [vmem:[%s3 + $0x28] sm:$0xff]
    %v155 = vld [vmem:[%s3 + $0x30] sm:$0xff]
    %v156 = vld [vmem:[%s3 + $0x38] sm:$0xff]
    %v157 = vld [vmem:[%s3 + $0x40] sm:$0xff]
    %v158 = vld [vmem:[%s3 + $0x48] sm:$0xff]
    %v159 = vld [vmem:[%s3 + $0x50] sm:$0xff]
    %v160 = vld [vmem:[%s3 + $0x58] sm:$0xff]
    %v161 = vld [vmem:[%s3 + $0x60] sm:$0xff]
    %v162 = vld [vmem:[%s3 + $0x68] sm:$0xff]
    %v163 = vld [vmem:[%s3 + $0x70] sm:$0xff]
    %v164 = vld [vmem:[%s3 + $0x78] sm:$0xff]
    %v165 = vld [vmem:[%s4] sm:$0x1]
    %v167 = vlaneseq
    %v168 = vshrl.u32 %v167, 7
    %v169 = vsub.s32 0, %v168
    %v170 = vrot.slane %v165, %v169
    %172 = vmatprep.subr.mxu0 0.0
    %173 = vmatpush1.msra.mxu0 %v164
    %174 = vmatprep.subr.mxu0 0.0
    %175 = vmatpush1.msra.mxu0 %v163
    %176 = vmatprep.subr.mxu0 0.0
    %177 = vmatpush1.msra.mxu0 %v162
    %178 = vmatprep.subr.mxu0 0.0
    %179 = vmatpush1.msra.mxu0 %v161
    %180 = vmatprep.subr.mxu0 0.0
    %181 = vmatpush1.msra.mxu0 %v160
    %182 = vmatprep.subr.mxu0 0.0
    %183 = vmatpush1.msra.mxu0 %v159
    %184 = vmatprep.subr.mxu0 0.0
    %185 = vmatpush1.msra.mxu0 %v158
    %186 = vmatprep.subr.mxu0 0.0
    %187 = vmatpush1.msra.mxu0 %v157
    %188 = vmatprep.subr.mxu0 0.0
    %189 = vmatpush1.msra.mxu0 %v156
    %190 = vmatprep.subr.mxu0 0.0
    %191 = vmatpush1.msra.mxu0 %v155
    %192 = vmatprep.subr.mxu0 0.0
    %193 = vmatpush1.msra.mxu0 %v154
    %194 = vmatprep.subr.mxu0 0.0
    %195 = vmatpush1.msra.mxu0 %v153
    %196 = vmatprep.subr.mxu0 0.0
    %197 = vmatpush1.msra.mxu0 %v152
    %198 = vmatprep.subr.mxu0 0.0
    %199 = vmatpush1.msra.mxu0 %v151
    %200 = vmatprep.subr.mxu0 0.0
    %201 = vmatpush1.msra.mxu0 %v150
    %202 = vmatprep.subr.mxu0 0.0
    %203 = vmatpush1.msra.mxu0 %v149
    %204 = vmatprep.subr.mxu0 0.0
    %205 = vmatpush2.msra.mxu0 0.0
    %206 = vmatprep.subr.mxu0 0.0
    %207 = vmatpush2.msra.mxu0 0.0
    %208 = vmatprep.subr.mxu0 0.0
    %209 = vmatpush2.msra.mxu0 0.0
    %210 = vmatprep.subr.mxu0 0.0
    %211 = vmatpush2.msra.mxu0 0.0
    %212 = vmatprep.subr.mxu0 0.0
    %213 = vmatpush2.msra.mxu0 0.0
    %214 = vmatprep.subr.mxu0 0.0
    %215 = vmatpush2.msra.mxu0 0.0
    %216 = vmatprep.subr.mxu0 0.0
    %217 = vmatpush2.msra.mxu0 0.0
    %218 = vmatprep.subr.mxu0 0.0
    %219 = vmatpush2.msra.mxu0 0.0
    %220 = vmatprep.subr.mxu0 0.0
    %221 = vmatpush2.msra.mxu0 0.0
    %222 = vmatprep.subr.mxu0 0.0
    %223 = vmatpush2.msra.mxu0 0.0
    %224 = vmatprep.subr.mxu0 0.0
    %225 = vmatpush2.msra.mxu0 0.0
    %226 = vmatprep.subr.mxu0 0.0
    %227 = vmatpush2.msra.mxu0 0.0
    %228 = vmatprep.subr.mxu0 0.0
    %229 = vmatpush2.msra.mxu0 0.0
    %230 = vmatprep.subr.mxu0 0.0
    %231 = vmatpush2.msra.mxu0 0.0
    %232 = vmatprep.subr.mxu0 0.0
    %233 = vmatpush2.msra.mxu0 0.0
    %234 = vmatprep.subr.mxu0 0.0
    %235 = vmatpush2.msra.mxu0 0.0
    %236 = vmatprep.mubr.f32.mxu0 0.0
    %237 = vmatmul.mubr.f32.gmra.mxu0 %v147
    %v238 = vpop.f32.mrf.mxu0
    %v239 = vadd.f32 %v170, %v238
    %v240 = vpop.f32.mrf.mxu0
    %241 = vmatprep.mubr.f32.mxu0 0.0
    %242 = vmatmul.mubr.f32.gmra.mxu0 %v148
    %v243 = vpop.f32.mrf.mxu0
    %v244 = vadd.f32 %v170, %v243
    %v245 = vpop.f32.mrf.mxu0
    %246 = vdwg.mxu0
    %v247 = vmax.f32 %v239, 0.0
    %v248 = vmax.f32 %v244, 0.0
    %v249 = vld [vmem:[%s5] sm:$0xff]
    %v250 = vld [vmem:[%s5 + $0x8] sm:$0xff]
    %v251 = vld [vmem:[%s5 + $0x10] sm:$0xff]
    %v252 = vld [vmem:[%s5 + $0x18] sm:$0xff]
    %v253 = vld [vmem:[%s5 + $0x20] sm:$0xff]
    %v254 = vld [vmem:[%s5 + $0x28] sm:$0xff]
    %v255 = vld [vmem:[%s5 + $0x30] sm:$0xff]
    %v256 = vld [vmem:[%s5 + $0x38] sm:$0xff]
    %v257 = vld [vmem:[%s5 + $0x40] sm:$0xff]
    %v258 = vld [vmem:[%s5 + $0x48] sm:$0xff]
    %v259 = vld [vmem:[%s5 + $0x50] sm:$0xff]
    %v260 = vld [vmem:[%s5 + $0x58] sm:$0xff]
    %v261 = vld [vmem:[%s5 + $0x60] sm:$0xff]
    %v262 = vld [vmem:[%s5 + $0x68] sm:$0xff]
    %v263 = vld [vmem:[%s5 + $0x70] sm:$0xff]
    %v264 = vld [vmem:[%s5 + $0x78] sm:$0xff]
    %v265 = vld [vmem:[%s6] sm:$0x1]
    %v267 = vlaneseq
    %v268 = vshrl.u32 %v267, 7
    %v269 = vsub.s32 0, %v268
    %v270 = vrot.slane %v265, %v269
    %272 = vmatprep.subr.mxu0 0.0
    %273 = vmatpush1.msra.mxu0 %v264
    %274 = vmatprep.subr.mxu0 0.0
    %275 = vmatpush1.msra.mxu0 %v263
    %276 = vmatprep.subr.mxu0 0.0
    %277 = vmatpush1.msra.mxu0 %v262
    %278 = vmatprep.subr.mxu0 0.0
    %279 = vmatpush1.msra.mxu0 %v261
    %280 = vmatprep.subr.mxu0 0.0
    %281 = vmatpush1.msra.mxu0 %v260
    %282 = vmatprep.subr.mxu0 0.0
    %283 = vmatpush1.msra.mxu0 %v259
    %284 = vmatprep.subr.mxu0 0.0
    %285 = vmatpush1.msra.mxu0 %v258
    %286 = vmatprep.subr.mxu0 0.0
    %287 = vmatpush1.msra.mxu0 %v257
    %288 = vmatprep.subr.mxu0 0.0
    %289 = vmatpush1.msra.mxu0 %v256
    %290 = vmatprep.subr.mxu0 0.0
    %291 = vmatpush1.msra.mxu0 %v255
    %292 = vmatprep.subr.mxu0 0.0
    %293 = vmatpush1.msra.mxu0 %v254
    %294 = vmatprep.subr.mxu0 0.0
    %295 = vmatpush1.msra.mxu0 %v253
    %296 = vmatprep.subr.mxu0 0.0
    %297 = vmatpush1.msra.mxu0 %v252
    %298 = vmatprep.subr.mxu0 0.0
    %299 = vmatpush1.msra.mxu0 %v251
    %300 = vmatprep.subr.mxu0 0.0
    %301 = vmatpush1.msra.mxu0 %v250
    %302 = vmatprep.subr.mxu0 0.0
    %303 = vmatpush1.msra.mxu0 %v249
    %304 = vmatprep.subr.mxu0 0.0
    %305 = vmatpush2.msra.mxu0 0.0
    %306 = vmatprep.subr.mxu0 0.0
    %307 = vmatpush2.msra.mxu0 0.0
    %308 = vmatprep.subr.mxu0 0.0
    %309 = vmatpush2.msra.mxu0 0.0
    %310 = vmatprep.subr.mxu0 0.0
    %311 = vmatpush2.msra.mxu0 0.0
    %312 = vmatprep.subr.mxu0 0.0
    %313 = vmatpush2.msra.mxu0 0.0
    %314 = vmatprep.subr.mxu0 0.0
    %315 = vmatpush2.msra.mxu0 0.0
    %316 = vmatprep.subr.mxu0 0.0
    %317 = vmatpush2.msra.mxu0 0.0
    %318 = vmatprep.subr.mxu0 0.0
    %319 = vmatpush2.msra.mxu0 0.0
    %320 = vmatprep.subr.mxu0 0.0
    %321 = vmatpush2.msra.mxu0 0.0
    %322 = vmatprep.subr.mxu0 0.0
    %323 = vmatpush2.msra.mxu0 0.0
    %324 = vmatprep.subr.mxu0 0.0
    %325 = vmatpush2.msra.mxu0 0.0
    %326 = vmatprep.subr.mxu0 0.0
    %327 = vmatpush2.msra.mxu0 0.0
    %328 = vmatprep.subr.mxu0 0.0
    %329 = vmatpush2.msra.mxu0 0.0
    %330 = vmatprep.subr.mxu0 0.0
    %331 = vmatpush2.msra.mxu0 0.0
    %332 = vmatprep.subr.mxu0 0.0
    %333 = vmatpush2.msra.mxu0 0.0
    %334 = vmatprep.subr.mxu0 0.0
    %335 = vmatpush2.msra.mxu0 0.0
    %336 = vmatprep.mubr.f32.mxu0 0.0
    %337 = vmatmul.mubr.f32.gmra.mxu0 %v247
    %v338 = vpop.f32.mrf.mxu0
    %v339 = vadd.f32 %v270, %v338
    %v340 = vpop.f32.mrf.mxu0
    %341 = vmatprep.mubr.f32.mxu0 0.0
    %342 = vmatmul.mubr.f32.gmra.mxu0 %v248
    %v343 = vpop.f32.mrf.mxu0
    %v344 = vadd.f32 %v270, %v343
    %v345 = vpop.f32.mrf.mxu0
    %346 = vdwg.mxu0
    %vm347 = vcmask 64512
    %348 = vst.msk [vmem:[%s7] sm:$0xff] %vm347, %v339
    %349 = vst.msk [vmem:[%s7 + $0x8] sm:$0xff] %vm347, %v344
    // Predicated region
    $region38: #{tpu_custom_call.1} parent=1 // pred_check
      _
    $region39: #{tpu_custom_call.1} parent=1 // pred_check_branch
      %351 = sbr.rel (0) target = $region41
    $region40: #{tpu_custom_call.1} parent=1 // pred_region
      _
    $region41: #{tpu_custom_call.1} parent=1 // pred_fallthru
      _
    // Predicated region
    $region42: #{tpu_custom_call.1} parent=1 // pred_check
      _
    $region43: #{tpu_custom_call.1} parent=1 // pred_check_branch
      %353 = sbr.rel (0) target = $region45
    $region44: #{tpu_custom_call.1} parent=1 // pred_region
      _
    $region45: #{tpu_custom_call.1} parent=1 // pred_fallthru
      _
    %354 = vsyncpa [#allocation3], 1
    %355 = vsyncpa [#allocation5], 1

</llo_original>
